<compile_context>
chip_gen: v7x
topology: tpu7x:2x2x1
jax: 0.10.0
libtpu: 0.0.40
codegen_flags: <defaults>
</compile_context>

<pallas_src>
import math

import jax
import jax.numpy as jnp
from jax.experimental import pallas as pl
from jax.experimental.pallas import tpu as pltpu


def _copy_kernel(x_ref, o_ref):
    # Identity copy: squeeze carries every element through unchanged.
    o_ref[...] = x_ref[...]


def _pick_lane_width(total: int) -> int:
    """Largest lane width in {2048..128} that divides `total` (0 if none)."""
    for lane in (2048, 1024, 512, 256, 128):
        if total % lane == 0:
            return lane
    return 0


def _materialized_copy(x_flat: jax.Array, total: int, last: int,
                       tile_budget_bytes: int) -> jax.Array:
    """Tiled, pipelined, lane-dense identity copy of a flat buffer."""
    itemsize = jnp.dtype(x_flat.dtype).itemsize

    # Lane-dense view: biggest multiple-of-128 lane width that divides the
    # element count.  Fall back to the original trailing dim (full-column
    # single-axis block, still legal) for odd sizes.
    lanes = _pick_lane_width(total)
    if lanes == 0:
        lanes = last
    rows = total // lanes
    x2d = jnp.reshape(x_flat, (rows, lanes))

    # Sublane minimum per dtype width (f32 -> 8, bf16/f16 -> 16, int8/fp8 -> 32).
    sub = max(8, 32 // itemsize)

    # Row-tile cap so that (2 in + 2 out) double-buffered tiles stay well
    # inside the scoped VMEM budget on every generation (incl. v7x's 32 MiB).
    tm_cap = max(sub, (tile_budget_bytes // (lanes * itemsize)) // sub * sub)

    if rows < sub or rows % sub != 0:
        tm = rows                      # full-extent block along rows (always legal)
    else:
        tm = min(rows, tm_cap)         # multiple of `sub` by construction

    grid = (pl.cdiv(rows, tm),)

    # NOTE: if the caller donates the input buffer, input_output_aliases={0: 0}
    # can additionally be passed to elide the second HBM allocation.
    out2d = pl.pallas_call(
        _copy_kernel,
        out_shape=jax.ShapeDtypeStruct((rows, lanes), x2d.dtype),
        grid_spec=pltpu.PrefetchScalarGridSpec(
            num_scalar_prefetch=0,
            grid=grid,
            in_specs=[pl.BlockSpec((tm, lanes), lambda i: (i, 0))],
            out_specs=pl.BlockSpec((tm, lanes), lambda i: (i, 0)),
        ),
        compiler_params=pltpu.CompilerParams(
            # Independent row tiles: shard across both TensorCores on v7x.
            dimension_semantics=("parallel",),
        ),
    )(x2d)
    return out2d


def squeeze_pallas(x: jax.Array, *, materialize: bool = False,
                   tile_budget_bytes: int = 4 * 1024 * 1024) -> jax.Array:
    """Equivalent of torch.Tensor.squeeze(): drop all size-1 dims.

    Default (materialize=False): metadata-only reshape — zero HBM traffic,
    which is the correct implementation of squeeze() on a contiguous buffer.

    materialize=True: additionally force a fresh buffer via a tiled,
    lane-dense Pallas copy kernel (useful only when a copy is required).
    """
    squeezed_shape = tuple(d for d in x.shape if d != 1)
    total = math.prod(x.shape) if x.shape else 1

    # Degenerate cases (empty tensor / scalar result) and the default fast
    # path: pure shape relabeling, no kernel, no data movement.
    if not materialize or total == 0 or len(squeezed_shape) == 0:
        return jnp.reshape(x, squeezed_shape)

    x_flat = jnp.reshape(x, (total,))
    out2d = _materialized_copy(x_flat, total, x.shape[-1], tile_budget_bytes)
    return jnp.reshape(out2d, squeezed_shape)


if __name__ == "__main__":
    key = jax.random.PRNGKey(0)

    # NCHW-style input with a size-1 dim: (2, 1, 16, 16) -> (2, 16, 16)
    x = jax.random.normal(key, (2, 1, 16, 16), dtype=jnp.float32)
    ref = jnp.squeeze(x)

    # 1) Default path: metadata-only squeeze (no kernel, no HBM traffic).
    y_fast = squeeze_pallas(x)

    # 2) Materialized path: lane-dense tiled Pallas copy.
    y_copy = squeeze_pallas(x, materialize=True)

    jax.block_until_ready((y_fast, y_copy))
    assert y_fast.shape == ref.shape and y_fast.dtype == ref.dtype
    assert y_copy.shape == ref.shape and y_copy.dtype == ref.dtype
    assert bool(jnp.allclose(y_fast, ref))
    assert bool(jnp.allclose(y_copy, ref))

    # Exercise the multi-step pipelined grid with a tiny tile budget:
    # (2, 1, 128, 128) f32 -> lanes=2048, rows=16, TM=8 -> grid=(2,).
    x2 = jax.random.normal(key, (2, 1, 128, 128), dtype=jnp.float32)
    y2 = squeeze_pallas(x2, materialize=True, tile_budget_bytes=64 * 1024)
    jax.block_until_ready(y2)
    assert y2.shape == (2, 128, 128)
    assert bool(jnp.allclose(y2, jnp.squeeze(x2)))

    # bf16 path (sublane minimum 16) and an odd-shaped fallback view.
    x3 = jax.random.normal(key, (1, 32, 1, 256), dtype=jnp.bfloat16)
    y3 = squeeze_pallas(x3, materialize=True)
    x4 = jax.random.normal(key, (5, 1, 3), dtype=jnp.float32)
    y4 = squeeze_pallas(x4, materialize=True)
    jax.block_until_ready((y3, y4))
    assert y3.shape == (32, 256) and bool(jnp.allclose(y3, jnp.squeeze(x3)))
    assert y4.shape == (5, 3) and bool(jnp.allclose(y4, jnp.squeeze(x4)))

    # Scalar-result edge case (all dims size 1).
    x5 = jnp.ones((1, 1, 1), dtype=jnp.float32)
    assert squeeze_pallas(x5).shape == ()

    print("KERNEL_OK")
</pallas_src>

<mosaic_0001>
module attributes {stable_mosaic.version = 11 : i64} {
  func.func @_copy_kernel(%arg0: i32, %arg1: memref<1x512xf32, #tpu.memory_space<vmem>>, %arg2: memref<1x512xf32, #tpu.memory_space<vmem>>) attributes {dimension_semantics = [#tpu.dimension_semantics<parallel>], iteration_bounds = array<i64: 1>, scalar_prefetch = 0 : i64, scratch_operands = 0 : i64, tpu.core_type = #tpu.core_type<tc>, window_params = [{transform_indices = @transform_0, window_bounds = array<i64: 1, 512>}, {transform_indices = @transform_1, window_bounds = array<i64: 1, 512>}]} {
    %c0 = arith.constant 0 : index
    %c0_0 = arith.constant 0 : index
    %0 = vector.load %arg1[%c0, %c0_0] : memref<1x512xf32, #tpu.memory_space<vmem>>, vector<1x512xf32>
    %c0_1 = arith.constant 0 : index
    %c0_2 = arith.constant 0 : index
    %1 = vector.load %arg2[%c0_1, %c0_2] : memref<1x512xf32, #tpu.memory_space<vmem>>, vector<1x512xf32>
    tpu.vector_store %arg2[%c0_1, %c0_2], %0 {strides = array<i32>} : memref<1x512xf32, #tpu.memory_space<vmem>>, vector<1x512xf32>,
    return
  }
  func.func @transform_0(%arg0: i32) -> (i32, i32) {
    %c0_i32 = arith.constant 0 : i32
    %c0_i32_0 = arith.constant 0 : i32
    return %arg0, %c0_i32 : i32, i32
  }
  func.func @transform_1(%arg0: i32) -> (i32, i32) {
    %c0_i32 = arith.constant 0 : i32
    %c0_i32_0 = arith.constant 0 : i32
    return %arg0, %c0_i32 : i32, i32
  }
}

</mosaic_0001>

<llo_original>
// kernel: tpu_custom_call.1
$region0: #{tpu_custom_call.1}
  #allocation0 [shape = 'u32[]', space=smem, size = 0x4, offset = 0x4, fixed_abs, tag = 'smem constant byte address 0x4 - core index']
  #allocation1 [shape = 'u32[144,128]{1,0:T(1,128)}', space=vmem, size = 0x12000, scoped, tag = 'internal scratch']
  %s0 = inlined_call_operand.hbm [shape: f32[1,512], index: 0, kind: input, shape index: {}]
  %s1 = inlined_call_operand.hbm [shape: f32[1,512], index: 1, kind: output, shape index: {}]
  %s2 = sld [smem:[#allocation0]]
  $region18: #{tpu_custom_call.1} parent=0
    _
  %s4 = ssub.s32 1, %s2
  %s5 = scalar_select 0, %s4, %s2
  $region1: #{tpu_custom_call.1} parent=0
    #allocation2 [shape = 'u8[2048]{0}', space=vmem, size = 0x800, scoped, tag = 'input window, operand 0, single buffered']
    #allocation3 [shape = 's32[1]{0}', space=sflag, size = 0x4, scoped, tag = 'scoped memory for tpu_custom_call.1']
    #allocation4 [shape = 's32[1]{0}', space=sflag, size = 0x4, scoped, tag = 'scoped memory for tpu_custom_call.1']
    #allocation5 [shape = 'u8[2048]{0}', space=vmem, size = 0x800, scoped, tag = 'output window, operand 0, single buffered']
    %6 = vsyncpa [#allocation3], 0
    %7 = vsyncpa [#allocation4], 0
    // Predicated region
    $region2: #{tpu_custom_call.1} parent=1 // pred_check
      _
    $region3: #{tpu_custom_call.1} parent=1 // pred_check_branch
      %9 = sbr.rel (0) target = $region5
    $region4: #{tpu_custom_call.1} parent=1 // pred_region
      %s11 = ssub.s32 64, 64
      %12 = vsyncadd [#allocation3], %s11
      %s14 = sshll.u32 [#allocation2], 4
      %s15 = int_to_ptr.vmem [resolvable:$true] %s14
      %17 = dma.hbm_to_vmem [thread:$0]  %s0, 64, %s15, [#allocation3]
    $region5: #{tpu_custom_call.1} parent=1 // pred_fallthru
      _
    // Predicated region
    $region6: #{tpu_custom_call.1} parent=1 // pred_check
      _
    $region7: #{tpu_custom_call.1} parent=1 // pred_check_branch
      %19 = sbr.rel (0) target = $region9
    $region8: #{tpu_custom_call.1} parent=1 // pred_region
      %20 = dma.done [#allocation3], 64
    $region9: #{tpu_custom_call.1} parent=1 // pred_fallthru
      _
    %v21 = vld [vmem:[#allocation2] sm:$0xf]
    %v22 = vlaneseq
    %vm23 = vcmp.ge.s32.totalorder %v22, 0
    %vm24 = vcmp.lt.s32.totalorder %v22, 512
    %vm25 = vmand %vm23, %vm24
    %26 = vst.msk [vmem:[#allocation5] sm:$0xf] %vm25, %v21
    // Predicated region
    $region10: #{tpu_custom_call.1} parent=1 // pred_check
      _
    $region11: #{tpu_custom_call.1} parent=1 // pred_check_branch
      %28 = sbr.rel (0) target = $region13
    $region12: #{tpu_custom_call.1} parent=1 // pred_region
      %s30 = ssub.s32 64, 64
      %31 = vsyncadd [#allocation4], %s30
      %s33 = sshll.u32 [#allocation5], 4
      %s34 = int_to_ptr.vmem [resolvable:$true] %s33
      %36 = dma.vmem_to_hbm [thread:$0]  %s34, 64, %s1, [#allocation4]
    $region13: #{tpu_custom_call.1} parent=1 // pred_fallthru
      _
    // Predicated region
    $region14: #{tpu_custom_call.1} parent=1 // pred_check
      _
    $region15: #{tpu_custom_call.1} parent=1 // pred_check_branch
      %38 = sbr.rel (0) target = $region17
    $region16: #{tpu_custom_call.1} parent=1 // pred_region
      %39 = dma.done [#allocation4], 64
    $region17: #{tpu_custom_call.1} parent=1 // pred_fallthru
      _
    %40 = vsyncpa [#allocation3], 1
    %41 = vsyncpa [#allocation4], 1

</llo_original>
